<compile_context>
chip_gen: v7x
topology: tpu7x:2x2x1
jax: 0.10.0
libtpu: 0.0.40
codegen_flags: <defaults>
</compile_context>

<pallas_src>
import math

import jax
import jax.numpy as jnp
from jax.experimental import pallas as pl
from jax.experimental.pallas import tpu as pltpu


_GELU_C = math.sqrt(2.0 / math.pi)
_MIB = 1 << 20


def _gelu_tanh(x):
    # tanh runs on the EUP (separate bundle slot), so this is nearly free.
    return 0.5 * x * (1.0 + jnp.tanh(_GELU_C * (x + 0.044715 * x * x * x)))


# --------------------------------------------------------------------------
# Kernels
# --------------------------------------------------------------------------
def _mlp_kernel_resident(x_ref, w1_ref, b1_ref, w2_ref, b2_ref, o_ref):
    # x_ref: (TM, D_in)   w1_ref: (D_in, H)   b1_ref: (1, H)
    # w2_ref: (H, D_out)  b2_ref: (1, D_out)  o_ref: (TM, D_out)
    x = x_ref[...].astype(w1_ref.dtype)          # keep fc1 on the fast MXU path
    h = jnp.dot(x, w1_ref[...], preferred_element_type=jnp.float32)
    h = _gelu_tanh(h + b1_ref[...].astype(jnp.float32))
    out = jnp.dot(h.astype(w2_ref.dtype), w2_ref[...],
                  preferred_element_type=jnp.float32)
    out = out + b2_ref[...].astype(jnp.float32)
    o_ref[...] = out.astype(o_ref.dtype)


def _mlp_kernel_hidden_tiled(x_ref, w1_ref, b1_ref, w2_ref, b2_ref, o_ref,
                             acc_ref):
    # Streams W1 column tiles / W2 row tiles over the hidden axis; keeps a
    # (TM, D_out) f32 accumulator so no full weight residency is required.
    k = pl.program_id(1)

    @pl.when(k == 0)
    def _():
        acc_ref[...] = jnp.zeros_like(acc_ref)

    x = x_ref[...].astype(w1_ref.dtype)
    h = jnp.dot(x, w1_ref[...], preferred_element_type=jnp.float32)
    h = _gelu_tanh(h + b1_ref[...].astype(jnp.float32))
    acc_ref[...] += jnp.dot(h.astype(w2_ref.dtype), w2_ref[...],
                            preferred_element_type=jnp.float32)

    @pl.when(k == pl.num_programs(1) - 1)
    def _():
        o_ref[...] = (acc_ref[...]
                      + b2_ref[...].astype(jnp.float32)).astype(o_ref.dtype)


# --------------------------------------------------------------------------
# Tiling helpers
# --------------------------------------------------------------------------
def _pick_row_tile(m, block_rows):
    tm = min(block_rows, m)
    if tm < m:
        # MXU-friendly multiples (256 on v6e/v7x, 128 on v5e), min 8 sublanes.
        for mult in (256, 128, 64, 32, 16, 8):
            if tm >= mult:
                tm = (tm // mult) * mult
                break
        tm = max(8, tm)
    # Guarantee >= 2 grid steps so the "parallel" row axis can shard across
    # both TensorCores on v7x (no-op on single-TC v5e/v6e).
    if m > 8 and pl.cdiv(m, tm) == 1:
        half = ((pl.cdiv(m, 2) + 7) // 8) * 8
        if half < m:
            tm = half
    return tm


def _pick_hidden_tile(hidden, block_hidden):
    if block_hidden is not None and hidden % block_hidden == 0:
        return block_hidden
    for cand in (512, 256, 128):
        if cand <= hidden and hidden % cand == 0:
            return cand
    return hidden


def _weight_spec(shape, index_map, pipeline_mode):
    if pipeline_mode is None:
        return pl.BlockSpec(shape, index_map)
    return pl.BlockSpec(shape, index_map, pipeline_mode=pipeline_mode)


# --------------------------------------------------------------------------
# Wrapper
# --------------------------------------------------------------------------
def mlp_forward(x, w1, b1, w2, b2, *, block_rows=512, block_hidden=None,
                max_resident_weight_bytes=40 * _MIB):
    """Fused MLP forward.

    x : (..., D_in)
    w1: (D_in, H)   b1: (H,)      -- fc1 weight stored as (in, out)
    w2: (H, D_out)  b2: (D_out,)  -- fc2 weight stored as (in, out)
    """
    *lead, d_in = x.shape
    hidden = w1.shape[1]
    d_out = w2.shape[1]
    assert w1.shape == (d_in, hidden)
    assert w2.shape == (hidden, d_out)

    m = 1
    for s in lead:
        m *= s

    x2 = x.reshape(m, d_in)
    b1_2d = b1.reshape(1, hidden)
    b2_2d = b2.reshape(1, d_out)

    tm = _pick_row_tile(m, block_rows)
    n_row = pl.cdiv(m, tm)

    w_bytes = (w1.size * w1.dtype.itemsize + w2.size * w2.dtype.itemsize
               + b1.size * b1.dtype.itemsize + b2.size * b2.dtype.itemsize)
    use_hidden_tiling = (w_bytes > max_resident_weight_bytes
                         and hidden % 128 == 0)
    th = _pick_hidden_tile(hidden, block_hidden) if use_hidden_tiling else hidden

    # Explicit VMEM budget: streamed x/out tiles are double-buffered, weights
    # single-buffered, plus the f32 intermediates; clamped to a range that is
    # valid on v5e/v6e (128 MiB) and v7x (64 MiB per TC).
    io_bytes = 2 * tm * (d_in * x2.dtype.itemsize + d_out * x.dtype.itemsize)
    if use_hidden_tiling:
        per_step_w = ((d_in * th + th * d_out) * w1.dtype.itemsize
                      + th * b1.dtype.itemsize)
        need = (2 * per_step_w + d_out * b2.dtype.itemsize + io_bytes
                + tm * d_out * 4            # accumulator scratch
                + 2 * tm * th * 4)          # per-step intermediate
    else:
        need = w_bytes + io_bytes + 2 * tm * hidden * 4
    vmem_limit = int(min(max(need * 1.25, 32 * _MIB), 64 * _MIB))

    out_shape = jax.ShapeDtypeStruct((m, d_out), x.dtype)

    def run(single_buffer_weights):
        pm = pl.Buffered(1) if single_buffer_weights else None
        if not use_hidden_tiling:
            return pl.pallas_call(
                _mlp_kernel_resident,
                out_shape=out_shape,
                grid=(n_row,),
                in_specs=[
                    pl.BlockSpec((tm, d_in), lambda i: (i, 0)),       # x rows
                    _weight_spec((d_in, hidden), lambda i: (0, 0), pm),  # W1
                    _weight_spec((1, hidden), lambda i: (0, 0), pm),     # b1
                    _weight_spec((hidden, d_out), lambda i: (0, 0), pm),  # W2
                    _weight_spec((1, d_out), lambda i: (0, 0), pm),       # b2
                ],
                out_specs=pl.BlockSpec((tm, d_out), lambda i: (i, 0)),
                compiler_params=pltpu.CompilerParams(
                    dimension_semantics=("parallel",),
                    vmem_limit_bytes=vmem_limit,
                ),
            )(x2, w1, b1_2d, w2, b2_2d)
        else:
            n_hid = hidden // th
            return pl.pallas_call(
                _mlp_kernel_hidden_tiled,
                out_shape=out_shape,
                grid=(n_row, n_hid),
                in_specs=[
                    pl.BlockSpec((tm, d_in), lambda i, k: (i, 0)),    # x rows
                    pl.BlockSpec((d_in, th), lambda i, k: (0, k)),    # W1 cols
                    pl.BlockSpec((1, th), lambda i, k: (0, k)),       # b1 tile
                    pl.BlockSpec((th, d_out), lambda i, k: (k, 0)),   # W2 rows
                    _weight_spec((1, d_out), lambda i, k: (0, 0), pm),  # b2
                ],
                out_specs=pl.BlockSpec((tm, d_out), lambda i, k: (i, 0)),
                scratch_shapes=[pltpu.VMEM((tm, d_out), jnp.float32)],
                compiler_params=pltpu.CompilerParams(
                    dimension_semantics=("parallel", "arbitrary"),
                    vmem_limit_bytes=vmem_limit,
                ),
            )(x2, w1, b1_2d, w2, b2_2d)

    try:
        out2 = run(True)
    except Exception:
        # pipeline_mode=pl.Buffered(1) unsupported on this build; fall back to
        # default double-buffering (correctness unaffected).
        out2 = run(False)

    return out2.reshape(*lead, d_out)


# --------------------------------------------------------------------------
# Reference + self-test
# --------------------------------------------------------------------------
def _reference(x, w1, b1, w2, b2):
    h = jnp.dot(x, w1, precision=jax.lax.Precision.HIGHEST) + b1
    h = _gelu_tanh(h)
    out = jnp.dot(h, w2, precision=jax.lax.Precision.HIGHEST) + b2
    return out.astype(x.dtype)


if __name__ == "__main__":
    # Small shapes consistent with the module: batch=2, seq=16,
    # in_features=128, hidden_features=256, out_features=128.
    B, N = 2, 16
    D_IN, HIDDEN, D_OUT = 128, 256, 128

    key = jax.random.PRNGKey(0)
    kx, kw1, kb1, kw2, kb2 = jax.random.split(key, 5)

    x = jax.random.normal(kx, (B, N, D_IN), dtype=jnp.float32)
    # nn.Linear weights, pre-transposed to (in, out) for direct matmul.
    w1 = jax.random.normal(kw1, (D_IN, HIDDEN), dtype=jnp.float32) * 0.05
    b1 = jax.random.normal(kb1, (HIDDEN,), dtype=jnp.float32) * 0.05
    w2 = jax.random.normal(kw2, (HIDDEN, D_OUT), dtype=jnp.float32) * 0.05
    b2 = jax.random.normal(kb2, (D_OUT,), dtype=jnp.float32) * 0.05

    ref = _reference(x, w1, b1, w2, b2)

    # Path A: resident weights; row axis is auto-split into 2 tiles (v7x TCs).
    out_a = jax.block_until_ready(mlp_forward(x, w1, b1, w2, b2))
    assert out_a.shape == (B, N, D_OUT) and out_a.dtype == x.dtype
    assert jnp.allclose(out_a, ref, atol=1e-4, rtol=1e-4), (
        "resident path mismatch, max abs diff "
        f"{float(jnp.max(jnp.abs(out_a - ref)))}"
    )

    # Path B: force the hidden-dim-tiled path (what large weights use on v7x).
    out_b = jax.block_until_ready(
        mlp_forward(x, w1, b1, w2, b2, block_hidden=128,
                    max_resident_weight_bytes=0))
    assert out_b.shape == (B, N, D_OUT) and out_b.dtype == x.dtype
    assert jnp.allclose(out_b, ref, atol=1e-4, rtol=1e-4), (
        "hidden-tiled path mismatch, max abs diff "
        f"{float(jnp.max(jnp.abs(out_b - ref)))}"
    )

    print("KERNEL_OK")
</pallas_src>

<mosaic_0001>
module attributes {stable_mosaic.version = 11 : i64} {
  func.func @_mlp_kernel_resident(%arg0: i32, %arg1: memref<16x128xf32, #tpu.memory_space<vmem>>, %arg2: memref<128x256xf32, #tpu.memory_space<vmem>>, %arg3: memref<1x256xf32, #tpu.memory_space<vmem>>, %arg4: memref<256x128xf32, #tpu.memory_space<vmem>>, %arg5: memref<1x128xf32, #tpu.memory_space<vmem>>, %arg6: memref<16x128xf32, #tpu.memory_space<vmem>>) attributes {dimension_semantics = [#tpu.dimension_semantics<parallel>], iteration_bounds = array<i64: 2>, scalar_prefetch = 0 : i64, scratch_operands = 0 : i64, tpu.core_type = #tpu.core_type<tc>, window_params = [{transform_indices = @transform_0, window_bounds = array<i64: 16, 128>}, {pipeline_mode = #tpu.pipeline_mode<synchronous>, transform_indices = @transform_1, window_bounds = array<i64: 128, 256>}, {pipeline_mode = #tpu.pipeline_mode<synchronous>, transform_indices = @transform_2, window_bounds = array<i64: 1, 256>}, {pipeline_mode = #tpu.pipeline_mode<synchronous>, transform_indices = @transform_3, window_bounds = array<i64: 256, 128>}, {pipeline_mode = #tpu.pipeline_mode<synchronous>, transform_indices = @transform_4, window_bounds = array<i64: 1, 128>}, {transform_indices = @transform_5, window_bounds = array<i64: 16, 128>}]} {
    %c0 = arith.constant 0 : index
    %c0_0 = arith.constant 0 : index
    %0 = vector.load %arg1[%c0, %c0_0] : memref<16x128xf32, #tpu.memory_space<vmem>>, vector<16x128xf32>
    %c0_1 = arith.constant 0 : index
    %c0_2 = arith.constant 0 : index
    %1 = vector.load %arg2[%c0_1, %c0_2] : memref<128x256xf32, #tpu.memory_space<vmem>>, vector<128x256xf32>
    %cst = arith.constant dense<0.000000e+00> : vector<16x256xf32>
    %2 = tpu.matmul %0, %1, %cst {dimension_numbers = #tpu.dot_dimension_numbers<[1], [0], [0], [1], [0, 0, 1, 1], [], []>} : vector<16x128xf32>, vector<128x256xf32>, vector<16x256xf32> -> vector<16x256xf32>
    %c0_3 = arith.constant 0 : index
    %c0_4 = arith.constant 0 : index
    %3 = vector.load %arg3[%c0_3, %c0_4] : memref<1x256xf32, #tpu.memory_space<vmem>>, vector<1x256xf32>
    %4 = vector.broadcast %3 : vector<1x256xf32> to vector<16x256xf32>
    %5 = arith.addf %2, %4 : vector<16x256xf32>
    %cst_5 = arith.constant 5.000000e-01 : f32
    %6 = vector.broadcast %cst_5 : f32 to vector<16x256xf32>
    %7 = arith.mulf %6, %5 : vector<16x256xf32>
    %cst_6 = arith.constant 4.471500e-02 : f32
    %8 = vector.broadcast %cst_6 : f32 to vector<16x256xf32>
    %9 = arith.mulf %8, %5 : vector<16x256xf32>
    %10 = arith.mulf %9, %5 : vector<16x256xf32>
    %11 = arith.mulf %10, %5 : vector<16x256xf32>
    %12 = arith.addf %5, %11 : vector<16x256xf32>
    %cst_7 = arith.constant 0.797884583 : f32
    %13 = vector.broadcast %cst_7 : f32 to vector<16x256xf32>
    %14 = arith.mulf %13, %12 : vector<16x256xf32>
    %15 = math.tanh %14 : vector<16x256xf32>
    %cst_8 = arith.constant 1.000000e+00 : f32
    %16 = vector.broadcast %cst_8 : f32 to vector<16x256xf32>
    %17 = arith.addf %16, %15 : vector<16x256xf32>
    %18 = arith.mulf %7, %17 : vector<16x256xf32>
    %c0_9 = arith.constant 0 : index
    %c0_10 = arith.constant 0 : index
    %19 = vector.load %arg4[%c0_9, %c0_10] : memref<256x128xf32, #tpu.memory_space<vmem>>, vector<256x128xf32>
    %cst_11 = arith.constant dense<0.000000e+00> : vector<16x128xf32>
    %20 = tpu.matmul %18, %19, %cst_11 {dimension_numbers = #tpu.dot_dimension_numbers<[1], [0], [0], [1], [0, 0, 1, 1], [], []>} : vector<16x256xf32>, vector<256x128xf32>, vector<16x128xf32> -> vector<16x128xf32>
    %c0_12 = arith.constant 0 : index
    %c0_13 = arith.constant 0 : index
    %21 = vector.load %arg5[%c0_12, %c0_13] : memref<1x128xf32, #tpu.memory_space<vmem>>, vector<1x128xf32>
    %22 = vector.broadcast %21 : vector<1x128xf32> to vector<16x128xf32>
    %23 = arith.addf %20, %22 : vector<16x128xf32>
    %c0_14 = arith.constant 0 : index
    %c0_15 = arith.constant 0 : index
    %24 = vector.load %arg6[%c0_14, %c0_15] : memref<16x128xf32, #tpu.memory_space<vmem>>, vector<16x128xf32>
    tpu.vector_store %arg6[%c0_14, %c0_15], %23 {strides = array<i32>} : memref<16x128xf32, #tpu.memory_space<vmem>>, vector<16x128xf32>,
    return
  }
  func.func @transform_0(%arg0: i32) -> (i32, i32) {
    %c0_i32 = arith.constant 0 : i32
    %c0_i32_0 = arith.constant 0 : i32
    return %arg0, %c0_i32 : i32, i32
  }
  func.func @transform_1(%arg0: i32) -> (i32, i32) {
    %c0_i32 = arith.constant 0 : i32
    %c0_i32_0 = arith.constant 0 : i32
    %c0_i32_1 = arith.constant 0 : i32
    return %c0_i32, %c0_i32_0 : i32, i32
  }
  func.func @transform_2(%arg0: i32) -> (i32, i32) {
    %c0_i32 = arith.constant 0 : i32
    %c0_i32_0 = arith.constant 0 : i32
    %c0_i32_1 = arith.constant 0 : i32
    return %c0_i32, %c0_i32_0 : i32, i32
  }
  func.func @transform_3(%arg0: i32) -> (i32, i32) {
    %c0_i32 = arith.constant 0 : i32
    %c0_i32_0 = arith.constant 0 : i32
    %c0_i32_1 = arith.constant 0 : i32
    return %c0_i32, %c0_i32_0 : i32, i32
  }
  func.func @transform_4(%arg0: i32) -> (i32, i32) {
    %c0_i32 = arith.constant 0 : i32
    %c0_i32_0 = arith.constant 0 : i32
    %c0_i32_1 = arith.constant 0 : i32
    return %c0_i32, %c0_i32_0 : i32, i32
  }
  func.func @transform_5(%arg0: i32) -> (i32, i32) {
    %c0_i32 = arith.constant 0 : i32
    %c0_i32_0 = arith.constant 0 : i32
    return %arg0, %c0_i32 : i32, i32
  }
}

module attributes {stable_mosaic.version = 11 : i64} {
  func.func @_mlp_kernel_resident(%arg0: i32, %arg1: memref<16x128xf32, #tpu.memory_space<vmem>>, %arg2: memref<128x256xf32, #tpu.memory_space<vmem>>, %arg3: memref<1x256xf32, #tpu.memory_space<vmem>>, %arg4: memref<256x128xf32, #tpu.memory_space<vmem>>, %arg5: memref<1x128xf32, #tpu.memory_space<vmem>>, %arg6: memref<16x128xf32, #tpu.memory_space<vmem>>) attributes {dimension_semantics = [#tpu.dimension_semantics<parallel>], iteration_bounds = array<i64: 2>, scalar_prefetch = 0 : i64, scratch_operands = 0 : i64, tpu.core_type = #tpu.core_type<tc>, window_params = [{transform_indices = @transform_0, window_bounds = array<i64: 16, 128>}, {pipeline_mode = #tpu.pipeline_mode<synchronous>, transform_indices = @transform_1, window_bounds = array<i64: 128, 256>}, {pipeline_mode = #tpu.pipeline_mode<synchronous>, transform_indices = @transform_2, window_bounds = array<i64: 1, 256>}, {pipeline_mode = #tpu.pipeline_mode<synchronous>, transform_indices = @transform_3, window_bounds = array<i64: 256, 128>}, {pipeline_mode = #tpu.pipeline_mode<synchronous>, transform_indices = @transform_4, window_bounds = array<i64: 1, 128>}, {transform_indices = @transform_5, window_bounds = array<i64: 16, 128>}]} {
    %c0 = arith.constant 0 : index
    %c0_0 = arith.constant 0 : index
    %0 = vector.load %arg1[%c0, %c0_0] : memref<16x128xf32, #tpu.memory_space<vmem>>, vector<16x128xf32>
    %c0_1 = arith.constant 0 : index
    %c0_2 = arith.constant 0 : index
    %1 = vector.load %arg2[%c0_1, %c0_2] : memref<128x256xf32, #tpu.memory_space<vmem>>, vector<128x256xf32>
    %cst = arith.constant dense<0.000000e+00> : vector<16x256xf32>
    %2 = tpu.matmul %0, %1, %cst {dimension_numbers = #tpu.dot_dimension_numbers<[1], [0], [0], [1], [0, 0, 1, 1], [], []>} : vector<16x128xf32>, vector<128x256xf32>, vector<16x256xf32> -> vector<16x256xf32>
    %c0_3 = arith.constant 0 : index
    %c0_4 = arith.constant 0 : index
    %3 = vector.load %arg3[%c0_3, %c0_4] : memref<1x256xf32, #tpu.memory_space<vmem>>, vector<1x256xf32>
    %4 = vector.broadcast %3 : vector<1x256xf32> to vector<16x256xf32>
    %5 = arith.addf %2, %4 : vector<16x256xf32>
    %cst_5 = arith.constant 5.000000e-01 : f32
    %6 = vector.broadcast %cst_5 : f32 to vector<16x256xf32>
    %7 = arith.mulf %6, %5 : vector<16x256xf32>
    %cst_6 = arith.constant 4.471500e-02 : f32
    %8 = vector.broadcast %cst_6 : f32 to vector<16x256xf32>
    %9 = arith.mulf %8, %5 : vector<16x256xf32>
    %10 = arith.mulf %9, %5 : vector<16x256xf32>
    %11 = arith.mulf %10, %5 : vector<16x256xf32>
    %12 = arith.addf %5, %11 : vector<16x256xf32>
    %cst_7 = arith.constant 0.797884583 : f32
    %13 = vector.broadcast %cst_7 : f32 to vector<16x256xf32>
    %14 = arith.mulf %13, %12 : vector<16x256xf32>
    %15 = math.tanh %14 : vector<16x256xf32>
    %cst_8 = arith.constant 1.000000e+00 : f32
    %16 = vector.broadcast %cst_8 : f32 to vector<16x256xf32>
    %17 = arith.addf %16, %15 : vector<16x256xf32>
    %18 = arith.mulf %7, %17 : vector<16x256xf32>
    %c0_9 = arith.constant 0 : index
    %c0_10 = arith.constant 0 : index
    %19 = vector.load %arg4[%c0_9, %c0_10] : memref<256x128xf32, #tpu.memory_space<vmem>>, vector<256x128xf32>
    %cst_11 = arith.constant dense<0.000000e+00> : vector<16x128xf32>
    %20 = tpu.matmul %18, %19, %cst_11 {dimension_numbers = #tpu.dot_dimension_numbers<[1], [0], [0], [1], [0, 0, 1, 1], [], []>} : vector<16x256xf32>, vector<256x128xf32>, vector<16x128xf32> -> vector<16x128xf32>
    %c0_12 = arith.constant 0 : index
    %c0_13 = arith.constant 0 : index
    %21 = vector.load %arg5[%c0_12, %c0_13] : memref<1x128xf32, #tpu.memory_space<vmem>>, vector<1x128xf32>
    %22 = vector.broadcast %21 : vector<1x128xf32> to vector<16x128xf32>
    %23 = arith.addf %20, %22 : vector<16x128xf32>
    %c0_14 = arith.constant 0 : index
    %c0_15 = arith.constant 0 : index
    %24 = vector.load %arg6[%c0_14, %c0_15] : memref<16x128xf32, #tpu.memory_space<vmem>>, vector<16x128xf32>
    tpu.vector_store %arg6[%c0_14, %c0_15], %23 {strides = array<i32>} : memref<16x128xf32, #tpu.memory_space<vmem>>, vector<16x128xf32>,
    return
  }
  func.func @transform_0(%arg0: i32) -> (i32, i32) {
    %c0_i32 = arith.constant 0 : i32
    %c0_i32_0 = arith.constant 0 : i32
    return %arg0, %c0_i32 : i32, i32
  }
  func.func @transform_1(%arg0: i32) -> (i32, i32) {
    %c0_i32 = arith.constant 0 : i32
    %c0_i32_0 = arith.constant 0 : i32
    %c0_i32_1 = arith.constant 0 : i32
    return %c0_i32, %c0_i32_0 : i32, i32
  }
  func.func @transform_2(%arg0: i32) -> (i32, i32) {
    %c0_i32 = arith.constant 0 : i32
    %c0_i32_0 = arith.constant 0 : i32
    %c0_i32_1 = arith.constant 0 : i32
    return %c0_i32, %c0_i32_0 : i32, i32
  }
  func.func @transform_3(%arg0: i32) -> (i32, i32) {
    %c0_i32 = arith.constant 0 : i32
    %c0_i32_0 = arith.constant 0 : i32
    %c0_i32_1 = arith.constant 0 : i32
    return %c0_i32, %c0_i32_0 : i32, i32
  }
  func.func @transform_4(%arg0: i32) -> (i32, i32) {
    %c0_i32 = arith.constant 0 : i32
    %c0_i32_0 = arith.constant 0 : i32
    %c0_i32_1 = arith.constant 0 : i32
    return %c0_i32, %c0_i32_0 : i32, i32
  }
  func.func @transform_5(%arg0: i32) -> (i32, i32) {
    %c0_i32 = arith.constant 0 : i32
    %c0_i32_0 = arith.constant 0 : i32
    return %arg0, %c0_i32 : i32, i32
  }
}

</mosaic_0001>

<llo_original>
// kernel: tpu_custom_call.1
$region0: #{tpu_custom_call.1}
  #allocation0 [shape = 'u32[]', space=smem, size = 0x4, offset = 0x4, fixed_abs, tag = 'smem constant byte address 0x4 - core index']
  #allocation1 [shape = 'u32[144,128]{1,0:T(1,128)}', space=vmem, size = 0x12000, scoped, tag = 'internal scratch']
  %s0 = inlined_call_operand.hbm [shape: f32[32,128], index: 0, kind: input, shape index: {}]
  %s1 = inlined_call_operand.hbm [shape: f32[128,256], index: 1, kind: input, shape index: {}]
  %s2 = inlined_call_operand.vmem [shape: f32[1,256], index: 2, kind: input, shape index: {}]
  %s3 = inlined_call_operand.hbm [shape: f32[256,128], index: 3, kind: input, shape index: {}]
  %s4 = inlined_call_operand.vmem [shape: f32[1,128], index: 4, kind: input, shape index: {}]
  %s5 = inlined_call_operand.hbm [shape: f32[32,128], index: 5, kind: output, shape index: {}]
  %s6 = sld [smem:[#allocation0]]
  $region65: #{tpu_custom_call.1} parent=0
    _
  %s8 = ssub.s32 1, %s6
  %s9 = scalar_select 0, %s8, %s6
  $region1: #{tpu_custom_call.1} parent=0
    #allocation2 [shape = 'u8[16384]{0}', space=vmem, size = 0x4000, scoped, tag = 'input window, operand 0']
    #allocation3 [shape = 's32[2]{0}', space=sflag, size = 0x8, scoped, tag = 'scoped memory for tpu_custom_call.1']
    #allocation4 [shape = 's32[2]{0}', space=sflag, size = 0x8, scoped, tag = 'scoped memory for tpu_custom_call.1']
    #allocation5 [shape = 'u8[131072]{0}', space=vmem, size = 0x20000, scoped, tag = 'input window, operand 1, single buffered']
    #allocation6 [shape = 's32[1]{0}', space=sflag, size = 0x4, scoped, tag = 'scoped memory for tpu_custom_call.1']
    #allocation7 [shape = 'u8[131072]{0}', space=vmem, size = 0x20000, scoped, tag = 'input window, operand 3, single buffered']
    #allocation8 [shape = 'u8[16384]{0}', space=vmem, size = 0x4000, scoped, tag = 'output window, operand 0']
    %10 = vsyncpa [#allocation3], 0
    %s11 = scalar_lea.sflag [#allocation3], 1
    %12 = vsyncpa %s11, 0
    %13 = vsyncpa [#allocation6], 0
    %14 = vsyncpa [#allocation4], 0
    %s15 = scalar_lea.sflag [#allocation4], 1
    %16 = vsyncpa %s15, 0
    loop: start=0, step=1, limit=4
    $region2: #{tpu_custom_call.1} parent=1 // loop_pre_header
      _
    $region3: #{tpu_custom_call.1} parent=1 // loop_header
      %s18 = sphi 0, %s22
      %p19 = scmp.ge.s32.totalorder %s18, 4
      %s28 = sphi 0, %s30
      %s31 = sphi 0, %s28
      %s32 = sphi 0, %s31
      %s48 = sphi 0, %s32
      %s52 = sphi 0, %s52
      %s54 = sphi 0, %s52
      %s55 = sphi 0, %s54
      %s69 = sphi 0, %s55
      %s73 = sphi 0, %s73
      %s75 = sphi 0, %s73
      %s76 = sphi 0, %s75
      %s90 = sphi 0, %s76
      %s94 = sphi 0, %s94
      %s96 = sphi 0, %s94
      %s97 = sphi 0, %s96
      %s111 = sphi 0, %s97
      %s115 = sphi 0, %s115
      %s117 = sphi 0, %s115
      %s118 = sphi 0, %s117
      %s132 = sphi 0, %s118
      %s138 = sphi 0, %s140
      %s141 = sphi 0, %s138
      %s142 = sphi 0, %s141
      %s158 = sphi 0, %s142
    $region4: #{tpu_custom_call.1} parent=1 // loop_header_branch
      %21 = sbr.rel (%p19) target = $region8
    $region5: #{tpu_custom_call.1} parent=1 // loop_body
      %s23 = ssub.s32 %s18, 1
      %s24 = ssub.s32 %s18, 2
      %s25 = sadd.s32 %s18, 1
      %s26 = ssub.s32 %s18, %s25
      %p27 = scmp.eq.s32.totalorder %s26, 0
      %s29 = sadd.s32 %s28, 1
      %s30 = scalar_select %p27, %s28, %s29
      %p33 = pneg %p27
      %p34 = scmp.eq.s32.totalorder %s18, 1
      %p35 = por %p33, %p34
      %p36 = scmp.ne.s32.totalorder %s28, %s31
      %p37 = scmp.eq.s32.totalorder %s18, 0
      %p38 = por %p36, %p37
      %p39 = scmp.ne.s32.totalorder %s28, %s31
      %p40 = scmp.eq.s32.totalorder %s23, 1
      %p41 = por %p39, %p40
      %p42 = scmp.ne.s32.totalorder %s31, %s32
      %p43 = scmp.eq.s32.totalorder %s23, 0
      %p44 = por %p42, %p43
      %p45 = scmp.ne.s32.totalorder %s31, %s32
      %p46 = scmp.eq.s32.totalorder %s24, 1
      %p47 = por %p45, %p46
      %p49 = scmp.ne.s32.totalorder %s32, %s48
      %p50 = scmp.eq.s32.totalorder %s24, 0
      %p51 = por %p49, %p50
      %s53 = sadd.s32 %s52, 1
      %p56 = scmp.eq.s32.totalorder %s18, 1
      %p57 = scmp.ne.s32.totalorder %s52, %s54
      %p58 = scmp.eq.s32.totalorder %s18, 0
      %p59 = por %p57, %p58
      %p60 = scmp.ne.s32.totalorder %s52, %s54
      %p61 = scmp.eq.s32.totalorder %s23, 1
      %p62 = por %p60, %p61
      %p63 = scmp.ne.s32.totalorder %s54, %s55
      %p64 = scmp.eq.s32.totalorder %s23, 0
      %p65 = por %p63, %p64
      %p66 = scmp.ne.s32.totalorder %s54, %s55
      %p67 = scmp.eq.s32.totalorder %s24, 1
      %p68 = por %p66, %p67
      %p70 = scmp.ne.s32.totalorder %s55, %s69
      %p71 = scmp.eq.s32.totalorder %s24, 0
      %p72 = por %p70, %p71
      %s74 = sadd.s32 %s73, 1
      %p77 = scmp.eq.s32.totalorder %s18, 1
      %p78 = scmp.ne.s32.totalorder %s73, %s75
      %p79 = scmp.eq.s32.totalorder %s18, 0
      %p80 = por %p78, %p79
      %p81 = scmp.ne.s32.totalorder %s73, %s75
      %p82 = scmp.eq.s32.totalorder %s23, 1
      %p83 = por %p81, %p82
      %p84 = scmp.ne.s32.totalorder %s75, %s76
      %p85 = scmp.eq.s32.totalorder %s23, 0
      %p86 = por %p84, %p85
      %p87 = scmp.ne.s32.totalorder %s75, %s76
      %p88 = scmp.eq.s32.totalorder %s24, 1
      %p89 = por %p87, %p88
      %p91 = scmp.ne.s32.totalorder %s76, %s90
      %p92 = scmp.eq.s32.totalorder %s24, 0
      %p93 = por %p91, %p92
      %s95 = sadd.s32 %s94, 1
      %p98 = scmp.eq.s32.totalorder %s18, 1
      %p99 = scmp.ne.s32.totalorder %s94, %s96
      %p100 = scmp.eq.s32.totalorder %s18, 0
      %p101 = por %p99, %p100
      %p102 = scmp.ne.s32.totalorder %s94, %s96
      %p103 = scmp.eq.s32.totalorder %s23, 1
      %p104 = por %p102, %p103
      %p105 = scmp.ne.s32.totalorder %s96, %s97
      %p106 = scmp.eq.s32.totalorder %s23, 0
      %p107 = por %p105, %p106
      %p108 = scmp.ne.s32.totalorder %s96, %s97
      %p109 = scmp.eq.s32.totalorder %s24, 1
      %p110 = por %p108, %p109
      %p112 = scmp.ne.s32.totalorder %s97, %s111
      %p113 = scmp.eq.s32.totalorder %s24, 0
      %p114 = por %p112, %p113
      %s116 = sadd.s32 %s115, 1
      %p119 = scmp.eq.s32.totalorder %s18, 1
      %p120 = scmp.ne.s32.totalorder %s115, %s117
      %p121 = scmp.eq.s32.totalorder %s18, 0
      %p122 = por %p120, %p121
      %p123 = scmp.ne.s32.totalorder %s115, %s117
      %p124 = scmp.eq.s32.totalorder %s23, 1
      %p125 = por %p123, %p124
      %p126 = scmp.ne.s32.totalorder %s117, %s118
      %p127 = scmp.eq.s32.totalorder %s23, 0
      %p128 = por %p126, %p127
      %p129 = scmp.ne.s32.totalorder %s117, %s118
      %p130 = scmp.eq.s32.totalorder %s24, 1
      %p131 = por %p129, %p130
      %p133 = scmp.ne.s32.totalorder %s118, %s132
      %p134 = scmp.eq.s32.totalorder %s24, 0
      %p135 = por %p133, %p134
      %s136 = ssub.s32 %s18, %s25
      %p137 = scmp.eq.s32.totalorder %s136, 0
      %s139 = sadd.s32 %s138, 1
      %s140 = scalar_select %p137, %s138, %s139
      %p143 = pneg %p137
      %p144 = scmp.eq.s32.totalorder %s18, 1
      %p145 = por %p143, %p144
      %p146 = scmp.ne.s32.totalorder %s138, %s141
      %p147 = scmp.eq.s32.totalorder %s18, 0
      %p148 = por %p146, %p147
      %p149 = scmp.ne.s32.totalorder %s138, %s141
      %p150 = scmp.eq.s32.totalorder %s23, 1
      %p151 = por %p149, %p150
      %p152 = scmp.ne.s32.totalorder %s141, %s142
      %p153 = scmp.eq.s32.totalorder %s23, 0
      %p154 = por %p152, %p153
      %p155 = scmp.ne.s32.totalorder %s141, %s142
      %p156 = scmp.eq.s32.totalorder %s24, 1
      %p157 = por %p155, %p156
      %p159 = scmp.ne.s32.totalorder %s142, %s158
      %p160 = scmp.eq.s32.totalorder %s24, 0
      %p161 = por %p159, %p160
      %p162 = scmp.le.s32.totalorder 1, %s18
      %p163 = scmp.lt.s32.totalorder %s18, 3
      %p164 = pnand %p162, %p163
      %p165 = pneg %p164
      // Predicated region
      $region9: #{tpu_custom_call.1} parent=5 // pred_check
        _
      $region10: #{tpu_custom_call.1} parent=5 // pred_check_branch
        %167 = sbr.rel (%p164) target = $region12
      $region11: #{tpu_custom_call.1} parent=5 // pred_region
        %s168 = ssub.s32 %s18, 1
        // Predicated region
        $region13: #{tpu_custom_call.1} parent=11 // pred_check
          %p169 = pneg %p65
        $region14: #{tpu_custom_call.1} parent=11 // pred_check_branch
          %171 = sbr.rel (%p169) target = $region16
        $region15: #{tpu_custom_call.1} parent=11 // pred_region
          %s173 = ssub.s32 4096, 4096
          %174 = vsyncadd [#allocation6], %s173
          %s175 = sshll.u32 [#allocation5], 4
          %s176 = int_to_ptr.vmem [resolvable:$true] %s175
          %181 = dma.hbm_to_vmem [thread:$0]  %s1, 4096, %s176, [#allocation6], 256, 256, 16
        $region16: #{tpu_custom_call.1} parent=11 // pred_fallthru
          _
        // Predicated region
        $region17: #{tpu_custom_call.1} parent=11 // pred_check
          %p182 = pneg %p86
        $region18: #{tpu_custom_call.1} parent=11 // pred_check_branch
          %184 = sbr.rel (%p182) target = $region20
        $region19: #{tpu_custom_call.1} parent=11 // pred_region
          _
        $region20: #{tpu_custom_call.1} parent=11 // pred_fallthru
          _
        // Predicated region
        $region21: #{tpu_custom_call.1} parent=11 // pred_check
          %p185 = pneg %p107
        $region22: #{tpu_custom_call.1} parent=11 // pred_check_branch
          %187 = sbr.rel (%p185) target = $region24
        $region23: #{tpu_custom_call.1} parent=11 // pred_region
          %s189 = ssub.s32 4096, 4096
          %190 = vsyncadd [#allocation6], %s189
          %s191 = sshll.u32 [#allocation7], 4
          %s192 = int_to_ptr.vmem [resolvable:$true] %s191
          %197 = dma.hbm_to_vmem [thread:$0]  %s3, 4096, %s192, [#allocation6], 128, 128, 8
        $region24: #{tpu_custom_call.1} parent=11 // pred_fallthru
          _
        // Predicated region
        $region25: #{tpu_custom_call.1} parent=11 // pred_check
          %p198 = pneg %p128
        $region26: #{tpu_custom_call.1} parent=11 // pred_check_branch
          %200 = sbr.rel (%p198) target = $region28
        $region27: #{tpu_custom_call.1} parent=11 // pred_region
          _
        $region28: #{tpu_custom_call.1} parent=11 // pred_fallthru
          _
      $region12: #{tpu_custom_call.1} parent=5 // pred_fallthru
        _
      %p201 = scmp.lt.s32.totalorder %s18, 2
      // Predicated region
      $region29: #{tpu_custom_call.1} parent=5 // pred_check
        %p202 = pneg %p201
      $region30: #{tpu_custom_call.1} parent=5 // pred_check_branch
        %204 = sbr.rel (%p202) target = $region32
      $region31: #{tpu_custom_call.1} parent=5 // pred_region
        // Predicated region
        $region33: #{tpu_custom_call.1} parent=31 // pred_check
          %p205 = pneg %p38
        $region34: #{tpu_custom_call.1} parent=31 // pred_check_branch
          %207 = sbr.rel (%p205) target = $region36
        $region35: #{tpu_custom_call.1} parent=31 // pred_region
          %s208 = sand.u32 %s28, 1
          %s209 = scalar_lea.sflag [#allocation3], %s208
          %s210 = sand.u32 %s28, 1
          %s211 = smul.addr %s210, 16
          %s212 = scalar_lea.vmem [#allocation2], %s211
          %s213 = smul.u32 2, %s18
          %s215 = ssub.s32 256, 256
          %216 = vsyncadd %s209, %s215
          %s217 = smul.addr %s213, 128
          %s218 = scalar_lea.hbm %s0, %s217
          %s219 = sshll.u32 %s212, 4
          %s220 = int_to_ptr.vmem [resolvable:$true] %s219
          %225 = dma.hbm_to_vmem [thread:$0]  %s218, 256, %s220, %s209, 128, 128, 8
        $region36: #{tpu_custom_call.1} parent=31 // pred_fallthru
          _
      $region32: #{tpu_custom_call.1} parent=5 // pred_fallthru
        _
      %p226 = scmp.le.s32.totalorder 1, %s18
      %p227 = scmp.lt.s32.totalorder %s18, 3
      %p228 = pnand %p226, %p227
      %p229 = pneg %p228
      // Predicated region
      $region37: #{tpu_custom_call.1} parent=5 // pred_check
        _
      $region38: #{tpu_custom_call.1} parent=5 // pred_check_branch
        %231 = sbr.rel (%p228) target = $region40
      $region39: #{tpu_custom_call.1} parent=5 // pred_region
        %s232 = ssub.s32 %s18, 1
        %s233 = sand.u32 %s31, 1
        %s234 = scalar_lea.sflag [#allocation3], %s233
        %s235 = sand.u32 %s31, 1
        %s236 = smul.addr %s235, 16
        %s237 = scalar_lea.vmem [#allocation2], %s236
        // Predicated region
        $region41: #{tpu_custom_call.1} parent=39 // pred_check
          %p238 = pneg %p44
        $region42: #{tpu_custom_call.1} parent=39 // pred_check_branch
          %240 = sbr.rel (%p238) target = $region44
        $region43: #{tpu_custom_call.1} parent=39 // pred_region
          %241 = dma.done %s234, 256
        $region44: #{tpu_custom_call.1} parent=39 // pred_fallthru
          _
        // Predicated region
        $region45: #{tpu_custom_call.1} parent=39 // pred_check
          %p242 = pneg %p65
        $region46: #{tpu_custom_call.1} parent=39 // pred_check_branch
          %244 = sbr.rel (%p242) target = $region48
        $region47: #{tpu_custom_call.1} parent=39 // pred_region
          %245 = dma.done [#allocation6], 4096
        $region48: #{tpu_custom_call.1} parent=39 // pred_fallthru
          _
        // Predicated region
        $region49: #{tpu_custom_call.1} parent=39 // pred_check
          %p246 = pneg %p107
        $region50: #{tpu_custom_call.1} parent=39 // pred_check_branch
          %248 = sbr.rel (%p246) target = $region52
        $region51: #{tpu_custom_call.1} parent=39 // pred_region
          %249 = dma.done [#allocation6], 4096
        $region52: #{tpu_custom_call.1} parent=39 // pred_fallthru
          _
        %s250 = sand.u32 %s31, 1
        %s251 = scalar_lea.sflag [#allocation3], %s250
        %s252 = sand.u32 %s31, 1
        %s253 = smul.addr %s252, 16
        %s254 = scalar_lea.vmem [#allocation2], %s253
        %p255 = pneg %p44
        %p256 = pneg %p41
        %p257 = pneg %p65
        %p258 = pneg %p62
        %p259 = pneg %p86
        %p260 = pneg %p83
        %p261 = pneg %p107
        %p262 = pneg %p104
        %p263 = pneg %p128
        %p264 = pneg %p125
        %p265 = pneg %p154
        %p266 = pneg %p151
        %s267 = sand.u32 %s141, 1
        %s268 = scalar_lea.sflag [#allocation4], %s267
        %s269 = sand.u32 %s141, 1
        %s270 = smul.addr %s269, 16
        %s271 = scalar_lea.vmem [#allocation8], %s270
        %s272 = smul.u32 2, %s23
        %s273 = smul.u32 2, %s23
        %v274 = vld [vmem:[%s237] sm:$0xff]
        %v275 = vld [vmem:[%s237 + $0x8] sm:$0xff]
        %v276 = vld [vmem:[#allocation5] sm:$0xff]
        %v277 = vld [vmem:[#allocation5 + $0x8] sm:$0xff]
        %v278 = vld [vmem:[#allocation5 + $0x10] sm:$0xff]
        %v279 = vld [vmem:[#allocation5 + $0x18] sm:$0xff]
        %v280 = vld [vmem:[#allocation5 + $0x20] sm:$0xff]
        %v281 = vld [vmem:[#allocation5 + $0x28] sm:$0xff]
        %v282 = vld [vmem:[#allocation5 + $0x30] sm:$0xff]
        %v283 = vld [vmem:[#allocation5 + $0x38] sm:$0xff]
        %v284 = vld [vmem:[#allocation5 + $0x40] sm:$0xff]
        %v285 = vld [vmem:[#allocation5 + $0x48] sm:$0xff]
        %v286 = vld [vmem:[#allocation5 + $0x50] sm:$0xff]
        %v287 = vld [vmem:[#allocation5 + $0x58] sm:$0xff]
        %v288 = vld [vmem:[#allocation5 + $0x60] sm:$0xff]
        %v289 = vld [vmem:[#allocation5 + $0x68] sm:$0xff]
        %v290 = vld [vmem:[#allocation5 + $0x70] sm:$0xff]
        %v291 = vld [vmem:[#allocation5 + $0x78] sm:$0xff]
        %v292 = vld [vmem:[#allocation5 + $0x80] sm:$0xff]
        %v293 = vld [vmem:[#allocation5 + $0x88] sm:$0xff]
        %v294 = vld [vmem:[#allocation5 + $0x90] sm:$0xff]
        %v295 = vld [vmem:[#allocation5 + $0x98] sm:$0xff]
        %v296 = vld [vmem:[#allocation5 + $0xa0] sm:$0xff]
        %v297 = vld [vmem:[#allocation5 + $0xa8] sm:$0xff]
        %v298 = vld [vmem:[#allocation5 + $0xb0] sm:$0xff]
        %v299 = vld [vmem:[#allocation5 + $0xb8] sm:$0xff]
        %v300 = vld [vmem:[#allocation5 + $0xc0] sm:$0xff]
        %v301 = vld [vmem:[#allocation5 + $0xc8] sm:$0xff]
        %v302 = vld [vmem:[#allocation5 + $0xd0] sm:$0xff]
        %v303 = vld [vmem:[#allocation5 + $0xd8] sm:$0xff]
        %v304 = vld [vmem:[#allocation5 + $0xe0] sm:$0xff]
        %v305 = vld [vmem:[#allocation5 + $0xe8] sm:$0xff]
        %v306 = vld [vmem:[#allocation5 + $0xf0] sm:$0xff]
        %v307 = vld [vmem:[#allocation5 + $0xf8] sm:$0xff]
        %v308 = vld [vmem:[%s2] sm:$0x3]
        %v310 = vlaneseq
        %v311 = vshrl.u32 %v310, 7
        %v312 = vsub.s32 0, %v311
        %v313 = vrot.slane %v308, %v312
        %v314 = vlaneseq
        %v315 = vshrl.u32 %v314, 7
        %v316 = vsub.s32 1, %v315
        %v317 = vrot.slane %v308, %v316
        %320 = vmatprep.subr.mxu0 %v277
        %321 = vmatpush1.msra.mxu0 %v276
        %322 = vmatprep.subr.mxu0 %v279
        %323 = vmatpush1.msra.mxu0 %v278
        %324 = vmatprep.subr.mxu0 %v281
        %325 = vmatpush1.msra.mxu0 %v280
        %326 = vmatprep.subr.mxu0 %v283
        %327 = vmatpush1.msra.mxu0 %v282
        %328 = vmatprep.subr.mxu0 %v285
        %329 = vmatpush1.msra.mxu0 %v284
        %330 = vmatprep.subr.mxu0 %v287
        %331 = vmatpush1.msra.mxu0 %v286
        %332 = vmatprep.subr.mxu0 %v289
        %333 = vmatpush1.msra.mxu0 %v288
        %334 = vmatprep.subr.mxu0 %v291
        %335 = vmatpush1.msra.mxu0 %v290
        %336 = vmatprep.subr.mxu0 %v293
        %337 = vmatpush1.msra.mxu0 %v292
        %338 = vmatprep.subr.mxu0 %v295
        %339 = vmatpush1.msra.mxu0 %v294
        %340 = vmatprep.subr.mxu0 %v297
        %341 = vmatpush1.msra.mxu0 %v296
        %342 = vmatprep.subr.mxu0 %v299
        %343 = vmatpush1.msra.mxu0 %v298
        %344 = vmatprep.subr.mxu0 %v301
        %345 = vmatpush1.msra.mxu0 %v300
        %346 = vmatprep.subr.mxu0 %v303
        %347 = vmatpush1.msra.mxu0 %v302
        %348 = vmatprep.subr.mxu0 %v305
        %349 = vmatpush1.msra.mxu0 %v304
        %350 = vmatprep.subr.mxu0 %v307
        %351 = vmatpush1.msra.mxu0 %v306
        %352 = vmatprep.subr.mxu0 0.0
        %353 = vmatpush1.msra.mxu0 0.0
        %354 = vmatprep.subr.mxu0 0.0
        %355 = vmatpush1.msra.mxu0 0.0
        %356 = vmatprep.subr.mxu0 0.0
        %357 = vmatpush1.msra.mxu0 0.0
        %358 = vmatprep.subr.mxu0 0.0
        %359 = vmatpush1.msra.mxu0 0.0
        %360 = vmatprep.subr.mxu0 0.0
        %361 = vmatpush1.msra.mxu0 0.0
        %362 = vmatprep.subr.mxu0 0.0
        %363 = vmatpush1.msra.mxu0 0.0
        %364 = vmatprep.subr.mxu0 0.0
        %365 = vmatpush1.msra.mxu0 0.0
        %366 = vmatprep.subr.mxu0 0.0
        %367 = vmatpush1.msra.mxu0 0.0
        %368 = vmatprep.subr.mxu0 0.0
        %369 = vmatpush1.msra.mxu0 0.0
        %370 = vmatprep.subr.mxu0 0.0
        %371 = vmatpush1.msra.mxu0 0.0
        %372 = vmatprep.subr.mxu0 0.0
        %373 = vmatpush1.msra.mxu0 0.0
        %374 = vmatprep.subr.mxu0 0.0
        %375 = vmatpush1.msra.mxu0 0.0
        %376 = vmatprep.subr.mxu0 0.0
        %377 = vmatpush1.msra.mxu0 0.0
        %378 = vmatprep.subr.mxu0 0.0
        %379 = vmatpush1.msra.mxu0 0.0
        %380 = vmatprep.subr.mxu0 0.0
        %381 = vmatpush1.msra.mxu0 0.0
        %382 = vmatprep.subr.mxu0 0.0
        %383 = vmatpush1.msra.mxu0 0.0
        %384 = vmatprep.mubr.f32.mxu0 0.0
        %385 = vmatmul.mubr.f32.gmra.mrb[0].mxu0 %v274
        %v386 = vpop.f32.mrb[0].mxu0
        %v387 = vadd.f32 %v313, %v386
        %v388 = vpop.f32.mrb[0].mxu0
        %v389 = vadd.f32 %v317, %v388
        %390 = vmatprep.mubr.f32.mxu0 0.0
        %391 = vmatmul.mubr.f32.gmra.mrb[0].mxu0 %v275
        %v392 = vpop.f32.mrb[0].mxu0
        %v393 = vadd.f32 %v313, %v392
        %v394 = vpop.f32.mrb[0].mxu0
        %v395 = vadd.f32 %v317, %v394
        %396 = vdwg.mxu0
        %v397 = vmul.f32 %v387, 0.5
        %v398 = vmul.f32 %v389, 0.5
        %v399 = vmul.f32 %v393, 0.5
        %v400 = vmul.f32 %v395, 0.5
        %v401 = vmul.f32 %v387, 0.044715
        %v402 = vmul.f32 %v389, 0.044715
        %v403 = vmul.f32 %v393, 0.044715
        %v404 = vmul.f32 %v395, 0.044715
        %v405 = vmul.f32 %v401, %v387
        %v406 = vmul.f32 %v402, %v389
        %v407 = vmul.f32 %v403, %v393
        %v408 = vmul.f32 %v404, %v395
        %v409 = vmul.f32 %v405, %v387
        %v410 = vmul.f32 %v406, %v389
        %v411 = vmul.f32 %v407, %v393
        %v412 = vmul.f32 %v408, %v395
        %v413 = vadd.f32 %v387, %v409
        %v414 = vadd.f32 %v389, %v410
        %v415 = vadd.f32 %v393, %v411
        %v416 = vadd.f32 %v395, %v412
        %v417 = vmul.f32 %v413, 0.7978846
        %v418 = vmul.f32 %v414, 0.7978846
        %v419 = vmul.f32 %v415, 0.7978846
        %v420 = vmul.f32 %v416, 0.7978846
        %v421 = vtanh.pop %v417
        %v422 = vtanh.pop %v418
        %v423 = vtanh.pop %v419
        %v424 = vtanh.pop %v420
        %v425 = vadd.f32 %v421, 1.0
        %v426 = vadd.f32 %v422, 1.0
        %v427 = vadd.f32 %v423, 1.0
        %v428 = vadd.f32 %v424, 1.0
        %v429 = vmul.f32 %v397, %v425
        %v430 = vmul.f32 %v398, %v426
        %v431 = vmul.f32 %v399, %v427
        %v432 = vmul.f32 %v400, %v428
        %v433 = vld [vmem:[#allocation7] sm:$0xff]
        %v434 = vld [vmem:[#allocation7 + $0x8] sm:$0xff]
        %v435 = vld [vmem:[#allocation7 + $0x10] sm:$0xff]
        %v436 = vld [vmem:[#allocation7 + $0x18] sm:$0xff]
        %v437 = vld [vmem:[#allocation7 + $0x20] sm:$0xff]
        %v438 = vld [vmem:[#allocation7 + $0x28] sm:$0xff]
        %v439 = vld [vmem:[#allocation7 + $0x30] sm:$0xff]
        %v440 = vld [vmem:[#allocation7 + $0x38] sm:$0xff]
        %v441 = vld [vmem:[#allocation7 + $0x40] sm:$0xff]
        %v442 = vld [vmem:[#allocation7 + $0x48] sm:$0xff]
        %v443 = vld [vmem:[#allocation7 + $0x50] sm:$0xff]
        %v444 = vld [vmem:[#allocation7 + $0x58] sm:$0xff]
        %v445 = vld [vmem:[#allocation7 + $0x60] sm:$0xff]
        %v446 = vld [vmem:[#allocation7 + $0x68] sm:$0xff]
        %v447 = vld [vmem:[#allocation7 + $0x70] sm:$0xff]
        %v448 = vld [vmem:[#allocation7 + $0x78] sm:$0xff]
        %v449 = vld [vmem:[#allocation7 + $0x80] sm:$0xff]
        %v450 = vld [vmem:[#allocation7 + $0x88] sm:$0xff]
        %v451 = vld [vmem:[#allocation7 + $0x90] sm:$0xff]
        %v452 = vld [vmem:[#allocation7 + $0x98] sm:$0xff]
        %v453 = vld [vmem:[#allocation7 + $0xa0] sm:$0xff]
        %v454 = vld [vmem:[#allocation7 + $0xa8] sm:$0xff]
        %v455 = vld [vmem:[#allocation7 + $0xb0] sm:$0xff]
        %v456 = vld [vmem:[#allocation7 + $0xb8] sm:$0xff]
        %v457 = vld [vmem:[#allocation7 + $0xc0] sm:$0xff]
        %v458 = vld [vmem:[#allocation7 + $0xc8] sm:$0xff]
        %v459 = vld [vmem:[#allocation7 + $0xd0] sm:$0xff]
        %v460 = vld [vmem:[#allocation7 + $0xd8] sm:$0xff]
        %v461 = vld [vmem:[#allocation7 + $0xe0] sm:$0xff]
        %v462 = vld [vmem:[#allocation7 + $0xe8] sm:$0xff]
        %v463 = vld [vmem:[#allocation7 + $0xf0] sm:$0xff]
        %v464 = vld [vmem:[#allocation7 + $0xf8] sm:$0xff]
        %v465 = vld [vmem:[%s4] sm:$0x1]
        %v467 = vlaneseq
        %v468 = vshrl.u32 %v467, 7
        %v469 = vsub.s32 0, %v468
        %v470 = vrot.slane %v465, %v469
        %472 = vmatprep.subr.mxu0 0.0
        %473 = vmatpush1.msra.mxu0 %v433
        %474 = vmatprep.subr.mxu0 0.0
        %475 = vmatpush1.msra.mxu0 %v434
        %476 = vmatprep.subr.mxu0 0.0
        %477 = vmatpush1.msra.mxu0 %v435
        %478 = vmatprep.subr.mxu0 0.0
        %479 = vmatpush1.msra.mxu0 %v436
        %480 = vmatprep.subr.mxu0 0.0
        %481 = vmatpush1.msra.mxu0 %v437
        %482 = vmatprep.subr.mxu0 0.0
        %483 = vmatpush1.msra.mxu0 %v438
        %484 = vmatprep.subr.mxu0 0.0
        %485 = vmatpush1.msra.mxu0 %v439
        %486 = vmatprep.subr.mxu0 0.0
        %487 = vmatpush1.msra.mxu0 %v440
        %488 = vmatprep.subr.mxu0 0.0
        %489 = vmatpush1.msra.mxu0 %v441
        %490 = vmatprep.subr.mxu0 0.0
        %491 = vmatpush1.msra.mxu0 %v442
        %492 = vmatprep.subr.mxu0 0.0
        %493 = vmatpush1.msra.mxu0 %v443
        %494 = vmatprep.subr.mxu0 0.0
        %495 = vmatpush1.msra.mxu0 %v444
        %496 = vmatprep.subr.mxu0 0.0
        %497 = vmatpush1.msra.mxu0 %v445
        %498 = vmatprep.subr.mxu0 0.0
        %499 = vmatpush1.msra.mxu0 %v446
        %500 = vmatprep.subr.mxu0 0.0
        %501 = vmatpush1.msra.mxu0 %v447
        %502 = vmatprep.subr.mxu0 0.0
        %503 = vmatpush1.msra.mxu0 %v448
        %504 = vmatprep.subr.mxu0 0.0
        %505 = vmatpush1.msra.mxu0 %v449
        %506 = vmatprep.subr.mxu0 0.0
        %507 = vmatpush1.msra.mxu0 %v450
        %508 = vmatprep.subr.mxu0 0.0
        %509 = vmatpush1.msra.mxu0 %v451
        %510 = vmatprep.subr.mxu0 0.0
        %511 = vmatpush1.msra.mxu0 %v452
        %512 = vmatprep.subr.mxu0 0.0
        %513 = vmatpush1.msra.mxu0 %v453
        %514 = vmatprep.subr.mxu0 0.0
        %515 = vmatpush1.msra.mxu0 %v454
        %516 = vmatprep.subr.mxu0 0.0
        %517 = vmatpush1.msra.mxu0 %v455
        %518 = vmatprep.subr.mxu0 0.0
        %519 = vmatpush1.msra.mxu0 %v456
        %520 = vmatprep.subr.mxu0 0.0
        %521 = vmatpush1.msra.mxu0 %v457
        %522 = vmatprep.subr.mxu0 0.0
        %523 = vmatpush1.msra.mxu0 %v458
        %524 = vmatprep.subr.mxu0 0.0
        %525 = vmatpush1.msra.mxu0 %v459
        %526 = vmatprep.subr.mxu0 0.0
        %527 = vmatpush1.msra.mxu0 %v460
        %528 = vmatprep.subr.mxu0 0.0
        %529 = vmatpush1.msra.mxu0 %v461
        %530 = vmatprep.subr.mxu0 0.0
        %531 = vmatpush1.msra.mxu0 %v462
        %532 = vmatprep.subr.mxu0 0.0
        %533 = vmatpush1.msra.mxu0 %v463
        %534 = vmatprep.subr.mxu0 0.0
        %535 = vmatpush1.msra.mxu0 %v464
        %536 = vmatprep.mubr.f32.mxu0 %v430
        %537 = vmatmul.mubr.f32.gmra.mrb[0].mxu0 %v429
        %v538 = vpop.f32.mrb[0].mxu0
        %v539 = vadd.f32 %v470, %v538
        %v540 = vpop.f32.mrb[0].mxu0
        %541 = vmatprep.mubr.f32.mxu0 %v432
        %542 = vmatmul.mubr.f32.gmra.mrb[0].mxu0 %v431
        %v543 = vpop.f32.mrb[0].mxu0
        %v544 = vadd.f32 %v470, %v543
        %v545 = vpop.f32.mrb[0].mxu0
        %546 = vdwg.mxu0
        %547 = vst [vmem:[%s271] sm:$0xff] %v539
        %548 = vst [vmem:[%s271 + $0x8] sm:$0xff] %v544
        %s549 = sand.u32 %s141, 1
        %s550 = scalar_lea.sflag [#allocation4], %s549
        %s551 = sand.u32 %s141, 1
        %s552 = smul.addr %s551, 16
        %s553 = scalar_lea.vmem [#allocation8], %s552
        // Predicated region
        $region53: #{tpu_custom_call.1} parent=39 // pred_check
          %p554 = pneg %p151
        $region54: #{tpu_custom_call.1} parent=39 // pred_check_branch
          %556 = sbr.rel (%p554) target = $region56
        $region55: #{tpu_custom_call.1} parent=39 // pred_region
          %s557 = smul.u32 2, %s23
          %s559 = ssub.s32 256, 256
          %560 = vsyncadd %s550, %s559
          %s561 = smul.addr %s557, 128
          %s562 = scalar_lea.hbm %s5, %s561
          %s563 = sshll.u32 %s553, 4
          %s564 = int_to_ptr.vmem [resolvable:$true] %s563
          %569 = dma.vmem_to_hbm [thread:$0]  %s564, 256, %s562, %s550, 128, 128, 8
        $region56: #{tpu_custom_call.1} parent=39 // pred_fallthru
          _
      $region40: #{tpu_custom_call.1} parent=5 // pred_fallthru
        _
      %p570 = scmp.le.s32.totalorder 2, %s18
      // Predicated region
      $region57: #{tpu_custom_call.1} parent=5 // pred_check
        %p571 = pneg %p570
      $region58: #{tpu_custom_call.1} parent=5 // pred_check_branch
        %573 = sbr.rel (%p571) target = $region60
      $region59: #{tpu_custom_call.1} parent=5 // pred_region
        %s574 = ssub.s32 %s18, 2
        // Predicated region
        $region61: #{tpu_custom_call.1} parent=59 // pred_check
          %p575 = pneg %p157
        $region62: #{tpu_custom_call.1} parent=59 // pred_check_branch
          %577 = sbr.rel (%p575) target = $region64
        $region63: #{tpu_custom_call.1} parent=59 // pred_region
          %s578 = sand.u32 %s142, 1
          %s579 = scalar_lea.sflag [#allocation4], %s578
          %s580 = sand.u32 %s142, 1
          %s581 = smul.addr %s580, 16
          %s582 = scalar_lea.vmem [#allocation8], %s581
          %583 = dma.done %s579, 256
        $region64: #{tpu_custom_call.1} parent=59 // pred_fallthru
          _
      $region60: #{tpu_custom_call.1} parent=5 // pred_fallthru
        _
    $region6: #{tpu_custom_call.1} parent=1 // loop_footer
      %s22 = sadd.s32 1, %s18
    $region7: #{tpu_custom_call.1} parent=1 // loop_footer_branch
      %17 = sbr.rel target = $region3
    $region8: #{tpu_custom_call.1} parent=1 // loop_exit
      _
    %584 = vsyncpa [#allocation3], 1
    %s585 = scalar_lea.sflag [#allocation3], 1
    %586 = vsyncpa %s585, 1
    %587 = vsyncpa [#allocation6], 1
    %588 = vsyncpa [#allocation4], 1
    %s589 = scalar_lea.sflag [#allocation4], 1
    %590 = vsyncpa %s589, 1

// kernel: tpu_custom_call.1
$region0: #{tpu_custom_call.1}
  #allocation0 [shape = 'u32[]', space=smem, size = 0x4, offset = 0x4, fixed_abs, tag = 'smem constant byte address 0x4 - core index']
  #allocation1 [shape = 'u32[144,128]{1,0:T(1,128)}', space=vmem, size = 0x12000, scoped, tag = 'internal scratch']
  %s0 = inlined_call_operand.hbm [shape: f32[32,128], index: 0, kind: input, shape index: {}]
  %s1 = inlined_call_operand.hbm [shape: f32[128,256], index: 1, kind: input, shape index: {}]
  %s2 = inlined_call_operand.vmem [shape: f32[1,256], index: 2, kind: input, shape index: {}]
  %s3 = inlined_call_operand.hbm [shape: f32[256,128], index: 3, kind: input, shape index: {}]
  %s4 = inlined_call_operand.vmem [shape: f32[1,128], index: 4, kind: input, shape index: {}]
  %s5 = inlined_call_operand.hbm [shape: f32[32,128], index: 5, kind: output, shape index: {}]
  %s6 = sld [smem:[#allocation0]]
  $region65: #{tpu_custom_call.1} parent=0
    _
  %s8 = ssub.s32 1, %s6
  %s9 = scalar_select 0, %s8, %s6
  $region1: #{tpu_custom_call.1} parent=0
    #allocation2 [shape = 'u8[16384]{0}', space=vmem, size = 0x4000, scoped, tag = 'input window, operand 0']
    #allocation3 [shape = 's32[2]{0}', space=sflag, size = 0x8, scoped, tag = 'scoped memory for tpu_custom_call.1']
    #allocation4 [shape = 's32[2]{0}', space=sflag, size = 0x8, scoped, tag = 'scoped memory for tpu_custom_call.1']
    #allocation5 [shape = 'u8[131072]{0}', space=vmem, size = 0x20000, scoped, tag = 'input window, operand 1, single buffered']
    #allocation6 [shape = 's32[1]{0}', space=sflag, size = 0x4, scoped, tag = 'scoped memory for tpu_custom_call.1']
    #allocation7 [shape = 'u8[131072]{0}', space=vmem, size = 0x20000, scoped, tag = 'input window, operand 3, single buffered']
    #allocation8 [shape = 'u8[16384]{0}', space=vmem, size = 0x4000, scoped, tag = 'output window, operand 0']
    %10 = vsyncpa [#allocation3], 0
    %s11 = scalar_lea.sflag [#allocation3], 1
    %12 = vsyncpa %s11, 0
    %13 = vsyncpa [#allocation6], 0
    %14 = vsyncpa [#allocation4], 0
    %s15 = scalar_lea.sflag [#allocation4], 1
    %16 = vsyncpa %s15, 0
    loop: start=0, step=1, limit=4
    $region2: #{tpu_custom_call.1} parent=1 // loop_pre_header
      _
    $region3: #{tpu_custom_call.1} parent=1 // loop_header
      %s18 = sphi 0, %s22
      %p19 = scmp.ge.s32.totalorder %s18, 4
      %s28 = sphi 0, %s30
      %s31 = sphi 0, %s28
      %s32 = sphi 0, %s31
      %s48 = sphi 0, %s32
      %s52 = sphi 0, %s52
      %s54 = sphi 0, %s52
      %s55 = sphi 0, %s54
      %s69 = sphi 0, %s55
      %s73 = sphi 0, %s73
      %s75 = sphi 0, %s73
      %s76 = sphi 0, %s75
      %s90 = sphi 0, %s76
      %s94 = sphi 0, %s94
      %s96 = sphi 0, %s94
      %s97 = sphi 0, %s96
      %s111 = sphi 0, %s97
      %s115 = sphi 0, %s115
      %s117 = sphi 0, %s115
      %s118 = sphi 0, %s117
      %s132 = sphi 0, %s118
      %s138 = sphi 0, %s140
      %s141 = sphi 0, %s138
      %s142 = sphi 0, %s141
      %s158 = sphi 0, %s142
    $region4: #{tpu_custom_call.1} parent=1 // loop_header_branch
      %21 = sbr.rel (%p19) target = $region8
    $region5: #{tpu_custom_call.1} parent=1 // loop_body
      %s23 = ssub.s32 %s18, 1
      %s24 = ssub.s32 %s18, 2
      %s25 = sadd.s32 %s18, 1
      %s26 = ssub.s32 %s18, %s25
      %p27 = scmp.eq.s32.totalorder %s26, 0
      %s29 = sadd.s32 %s28, 1
      %s30 = scalar_select %p27, %s28, %s29
      %p33 = pneg %p27
      %p34 = scmp.eq.s32.totalorder %s18, 1
      %p35 = por %p33, %p34
      %p36 = scmp.ne.s32.totalorder %s28, %s31
      %p37 = scmp.eq.s32.totalorder %s18, 0
      %p38 = por %p36, %p37
      %p39 = scmp.ne.s32.totalorder %s28, %s31
      %p40 = scmp.eq.s32.totalorder %s23, 1
      %p41 = por %p39, %p40
      %p42 = scmp.ne.s32.totalorder %s31, %s32
      %p43 = scmp.eq.s32.totalorder %s23, 0
      %p44 = por %p42, %p43
      %p45 = scmp.ne.s32.totalorder %s31, %s32
      %p46 = scmp.eq.s32.totalorder %s24, 1
      %p47 = por %p45, %p46
      %p49 = scmp.ne.s32.totalorder %s32, %s48
      %p50 = scmp.eq.s32.totalorder %s24, 0
      %p51 = por %p49, %p50
      %s53 = sadd.s32 %s52, 1
      %p56 = scmp.eq.s32.totalorder %s18, 1
      %p57 = scmp.ne.s32.totalorder %s52, %s54
      %p58 = scmp.eq.s32.totalorder %s18, 0
      %p59 = por %p57, %p58
      %p60 = scmp.ne.s32.totalorder %s52, %s54
      %p61 = scmp.eq.s32.totalorder %s23, 1
      %p62 = por %p60, %p61
      %p63 = scmp.ne.s32.totalorder %s54, %s55
      %p64 = scmp.eq.s32.totalorder %s23, 0
      %p65 = por %p63, %p64
      %p66 = scmp.ne.s32.totalorder %s54, %s55
      %p67 = scmp.eq.s32.totalorder %s24, 1
      %p68 = por %p66, %p67
      %p70 = scmp.ne.s32.totalorder %s55, %s69
      %p71 = scmp.eq.s32.totalorder %s24, 0
      %p72 = por %p70, %p71
      %s74 = sadd.s32 %s73, 1
      %p77 = scmp.eq.s32.totalorder %s18, 1
      %p78 = scmp.ne.s32.totalorder %s73, %s75
      %p79 = scmp.eq.s32.totalorder %s18, 0
      %p80 = por %p78, %p79
      %p81 = scmp.ne.s32.totalorder %s73, %s75
      %p82 = scmp.eq.s32.totalorder %s23, 1
      %p83 = por %p81, %p82
      %p84 = scmp.ne.s32.totalorder %s75, %s76
      %p85 = scmp.eq.s32.totalorder %s23, 0
      %p86 = por %p84, %p85
      %p87 = scmp.ne.s32.totalorder %s75, %s76
      %p88 = scmp.eq.s32.totalorder %s24, 1
      %p89 = por %p87, %p88
      %p91 = scmp.ne.s32.totalorder %s76, %s90
      %p92 = scmp.eq.s32.totalorder %s24, 0
      %p93 = por %p91, %p92
      %s95 = sadd.s32 %s94, 1
      %p98 = scmp.eq.s32.totalorder %s18, 1
      %p99 = scmp.ne.s32.totalorder %s94, %s96
      %p100 = scmp.eq.s32.totalorder %s18, 0
      %p101 = por %p99, %p100
      %p102 = scmp.ne.s32.totalorder %s94, %s96
      %p103 = scmp.eq.s32.totalorder %s23, 1
      %p104 = por %p102, %p103
      %p105 = scmp.ne.s32.totalorder %s96, %s97
      %p106 = scmp.eq.s32.totalorder %s23, 0
      %p107 = por %p105, %p106
      %p108 = scmp.ne.s32.totalorder %s96, %s97
      %p109 = scmp.eq.s32.totalorder %s24, 1
      %p110 = por %p108, %p109
      %p112 = scmp.ne.s32.totalorder %s97, %s111
      %p113 = scmp.eq.s32.totalorder %s24, 0
      %p114 = por %p112, %p113
      %s116 = sadd.s32 %s115, 1
      %p119 = scmp.eq.s32.totalorder %s18, 1
      %p120 = scmp.ne.s32.totalorder %s115, %s117
      %p121 = scmp.eq.s32.totalorder %s18, 0
      %p122 = por %p120, %p121
      %p123 = scmp.ne.s32.totalorder %s115, %s117
      %p124 = scmp.eq.s32.totalorder %s23, 1
      %p125 = por %p123, %p124
      %p126 = scmp.ne.s32.totalorder %s117, %s118
      %p127 = scmp.eq.s32.totalorder %s23, 0
      %p128 = por %p126, %p127
      %p129 = scmp.ne.s32.totalorder %s117, %s118
      %p130 = scmp.eq.s32.totalorder %s24, 1
      %p131 = por %p129, %p130
      %p133 = scmp.ne.s32.totalorder %s118, %s132
      %p134 = scmp.eq.s32.totalorder %s24, 0
      %p135 = por %p133, %p134
      %s136 = ssub.s32 %s18, %s25
      %p137 = scmp.eq.s32.totalorder %s136, 0
      %s139 = sadd.s32 %s138, 1
      %s140 = scalar_select %p137, %s138, %s139
      %p143 = pneg %p137
      %p144 = scmp.eq.s32.totalorder %s18, 1
      %p145 = por %p143, %p144
      %p146 = scmp.ne.s32.totalorder %s138, %s141
      %p147 = scmp.eq.s32.totalorder %s18, 0
      %p148 = por %p146, %p147
      %p149 = scmp.ne.s32.totalorder %s138, %s141
      %p150 = scmp.eq.s32.totalorder %s23, 1
      %p151 = por %p149, %p150
      %p152 = scmp.ne.s32.totalorder %s141, %s142
      %p153 = scmp.eq.s32.totalorder %s23, 0
      %p154 = por %p152, %p153
      %p155 = scmp.ne.s32.totalorder %s141, %s142
      %p156 = scmp.eq.s32.totalorder %s24, 1
      %p157 = por %p155, %p156
      %p159 = scmp.ne.s32.totalorder %s142, %s158
      %p160 = scmp.eq.s32.totalorder %s24, 0
      %p161 = por %p159, %p160
      %p162 = scmp.le.s32.totalorder 1, %s18
      %p163 = scmp.lt.s32.totalorder %s18, 3
      %p164 = pnand %p162, %p163
      %p165 = pneg %p164
      // Predicated region
      $region9: #{tpu_custom_call.1} parent=5 // pred_check
        _
      $region10: #{tpu_custom_call.1} parent=5 // pred_check_branch
        %167 = sbr.rel (%p164) target = $region12
      $region11: #{tpu_custom_call.1} parent=5 // pred_region
        %s168 = ssub.s32 %s18, 1
        // Predicated region
        $region13: #{tpu_custom_call.1} parent=11 // pred_check
          %p169 = pneg %p65
        $region14: #{tpu_custom_call.1} parent=11 // pred_check_branch
          %171 = sbr.rel (%p169) target = $region16
        $region15: #{tpu_custom_call.1} parent=11 // pred_region
          %s173 = ssub.s32 4096, 4096
          %174 = vsyncadd [#allocation6], %s173
          %s175 = sshll.u32 [#allocation5], 4
          %s176 = int_to_ptr.vmem [resolvable:$true] %s175
          %181 = dma.hbm_to_vmem [thread:$0]  %s1, 4096, %s176, [#allocation6], 256, 256, 16
        $region16: #{tpu_custom_call.1} parent=11 // pred_fallthru
          _
        // Predicated region
        $region17: #{tpu_custom_call.1} parent=11 // pred_check
          %p182 = pneg %p86
        $region18: #{tpu_custom_call.1} parent=11 // pred_check_branch
          %184 = sbr.rel (%p182) target = $region20
        $region19: #{tpu_custom_call.1} parent=11 // pred_region
          _
        $region20: #{tpu_custom_call.1} parent=11 // pred_fallthru
          _
        // Predicated region
        $region21: #{tpu_custom_call.1} parent=11 // pred_check
          %p185 = pneg %p107
        $region22: #{tpu_custom_call.1} parent=11 // pred_check_branch
          %187 = sbr.rel (%p185) target = $region24
        $region23: #{tpu_custom_call.1} parent=11 // pred_region
          %s189 = ssub.s32 4096, 4096
          %190 = vsyncadd [#allocation6], %s189
          %s191 = sshll.u32 [#allocation7], 4
          %s192 = int_to_ptr.vmem [resolvable:$true] %s191
          %197 = dma.hbm_to_vmem [thread:$0]  %s3, 4096, %s192, [#allocation6], 128, 128, 8
        $region24: #{tpu_custom_call.1} parent=11 // pred_fallthru
          _
        // Predicated region
        $region25: #{tpu_custom_call.1} parent=11 // pred_check
          %p198 = pneg %p128
        $region26: #{tpu_custom_call.1} parent=11 // pred_check_branch
          %200 = sbr.rel (%p198) target = $region28
        $region27: #{tpu_custom_call.1} parent=11 // pred_region
          _
        $region28: #{tpu_custom_call.1} parent=11 // pred_fallthru
          _
      $region12: #{tpu_custom_call.1} parent=5 // pred_fallthru
        _
      %p201 = scmp.lt.s32.totalorder %s18, 2
      // Predicated region
      $region29: #{tpu_custom_call.1} parent=5 // pred_check
        %p202 = pneg %p201
      $region30: #{tpu_custom_call.1} parent=5 // pred_check_branch
        %204 = sbr.rel (%p202) target = $region32
      $region31: #{tpu_custom_call.1} parent=5 // pred_region
        // Predicated region
        $region33: #{tpu_custom_call.1} parent=31 // pred_check
          %p205 = pneg %p38
        $region34: #{tpu_custom_call.1} parent=31 // pred_check_branch
          %207 = sbr.rel (%p205) target = $region36
        $region35: #{tpu_custom_call.1} parent=31 // pred_region
          %s208 = sand.u32 %s28, 1
          %s209 = scalar_lea.sflag [#allocation3], %s208
          %s210 = sand.u32 %s28, 1
          %s211 = smul.addr %s210, 16
          %s212 = scalar_lea.vmem [#allocation2], %s211
          %s213 = smul.u32 2, %s18
          %s215 = ssub.s32 256, 256
          %216 = vsyncadd %s209, %s215
          %s217 = smul.addr %s213, 128
          %s218 = scalar_lea.hbm %s0, %s217
          %s219 = sshll.u32 %s212, 4
          %s220 = int_to_ptr.vmem [resolvable:$true] %s219
          %225 = dma.hbm_to_vmem [thread:$0]  %s218, 256, %s220, %s209, 128, 128, 8
        $region36: #{tpu_custom_call.1} parent=31 // pred_fallthru
          _
      $region32: #{tpu_custom_call.1} parent=5 // pred_fallthru
        _
      %p226 = scmp.le.s32.totalorder 1, %s18
      %p227 = scmp.lt.s32.totalorder %s18, 3
      %p228 = pnand %p226, %p227
      %p229 = pneg %p228
      // Predicated region
      $region37: #{tpu_custom_call.1} parent=5 // pred_check
        _
      $region38: #{tpu_custom_call.1} parent=5 // pred_check_branch
        %231 = sbr.rel (%p228) target = $region40
      $region39: #{tpu_custom_call.1} parent=5 // pred_region
        %s232 = ssub.s32 %s18, 1
        %s233 = sand.u32 %s31, 1
        %s234 = scalar_lea.sflag [#allocation3], %s233
        %s235 = sand.u32 %s31, 1
        %s236 = smul.addr %s235, 16
        %s237 = scalar_lea.vmem [#allocation2], %s236
        // Predicated region
        $region41: #{tpu_custom_call.1} parent=39 // pred_check
          %p238 = pneg %p44
        $region42: #{tpu_custom_call.1} parent=39 // pred_check_branch
          %240 = sbr.rel (%p238) target = $region44
        $region43: #{tpu_custom_call.1} parent=39 // pred_region
          %241 = dma.done %s234, 256
        $region44: #{tpu_custom_call.1} parent=39 // pred_fallthru
          _
        // Predicated region
        $region45: #{tpu_custom_call.1} parent=39 // pred_check
          %p242 = pneg %p65
        $region46: #{tpu_custom_call.1} parent=39 // pred_check_branch
          %244 = sbr.rel (%p242) target = $region48
        $region47: #{tpu_custom_call.1} parent=39 // pred_region
          %245 = dma.done [#allocation6], 4096
        $region48: #{tpu_custom_call.1} parent=39 // pred_fallthru
          _
        // Predicated region
        $region49: #{tpu_custom_call.1} parent=39 // pred_check
          %p246 = pneg %p107
        $region50: #{tpu_custom_call.1} parent=39 // pred_check_branch
          %248 = sbr.rel (%p246) target = $region52
        $region51: #{tpu_custom_call.1} parent=39 // pred_region
          %249 = dma.done [#allocation6], 4096
        $region52: #{tpu_custom_call.1} parent=39 // pred_fallthru
          _
        %s250 = sand.u32 %s31, 1
        %s251 = scalar_lea.sflag [#allocation3], %s250
        %s252 = sand.u32 %s31, 1
        %s253 = smul.addr %s252, 16
        %s254 = scalar_lea.vmem [#allocation2], %s253
        %p255 = pneg %p44
        %p256 = pneg %p41
        %p257 = pneg %p65
        %p258 = pneg %p62
        %p259 = pneg %p86
        %p260 = pneg %p83
        %p261 = pneg %p107
        %p262 = pneg %p104
        %p263 = pneg %p128
        %p264 = pneg %p125
        %p265 = pneg %p154
        %p266 = pneg %p151
        %s267 = sand.u32 %s141, 1
        %s268 = scalar_lea.sflag [#allocation4], %s267
        %s269 = sand.u32 %s141, 1
        %s270 = smul.addr %s269, 16
        %s271 = scalar_lea.vmem [#allocation8], %s270
        %s272 = smul.u32 2, %s23
        %s273 = smul.u32 2, %s23
        %v274 = vld [vmem:[%s237] sm:$0xff]
        %v275 = vld [vmem:[%s237 + $0x8] sm:$0xff]
        %v276 = vld [vmem:[#allocation5] sm:$0xff]
        %v277 = vld [vmem:[#allocation5 + $0x8] sm:$0xff]
        %v278 = vld [vmem:[#allocation5 + $0x10] sm:$0xff]
        %v279 = vld [vmem:[#allocation5 + $0x18] sm:$0xff]
        %v280 = vld [vmem:[#allocation5 + $0x20] sm:$0xff]
        %v281 = vld [vmem:[#allocation5 + $0x28] sm:$0xff]
        %v282 = vld [vmem:[#allocation5 + $0x30] sm:$0xff]
        %v283 = vld [vmem:[#allocation5 + $0x38] sm:$0xff]
        %v284 = vld [vmem:[#allocation5 + $0x40] sm:$0xff]
        %v285 = vld [vmem:[#allocation5 + $0x48] sm:$0xff]
        %v286 = vld [vmem:[#allocation5 + $0x50] sm:$0xff]
        %v287 = vld [vmem:[#allocation5 + $0x58] sm:$0xff]
        %v288 = vld [vmem:[#allocation5 + $0x60] sm:$0xff]
        %v289 = vld [vmem:[#allocation5 + $0x68] sm:$0xff]
        %v290 = vld [vmem:[#allocation5 + $0x70] sm:$0xff]
        %v291 = vld [vmem:[#allocation5 + $0x78] sm:$0xff]
        %v292 = vld [vmem:[#allocation5 + $0x80] sm:$0xff]
        %v293 = vld [vmem:[#allocation5 + $0x88] sm:$0xff]
        %v294 = vld [vmem:[#allocation5 + $0x90] sm:$0xff]
        %v295 = vld [vmem:[#allocation5 + $0x98] sm:$0xff]
        %v296 = vld [vmem:[#allocation5 + $0xa0] sm:$0xff]
        %v297 = vld [vmem:[#allocation5 + $0xa8] sm:$0xff]
        %v298 = vld [vmem:[#allocation5 + $0xb0] sm:$0xff]
        %v299 = vld [vmem:[#allocation5 + $0xb8] sm:$0xff]
        %v300 = vld [vmem:[#allocation5 + $0xc0] sm:$0xff]
        %v301 = vld [vmem:[#allocation5 + $0xc8] sm:$0xff]
        %v302 = vld [vmem:[#allocation5 + $0xd0] sm:$0xff]
        %v303 = vld [vmem:[#allocation5 + $0xd8] sm:$0xff]
        %v304 = vld [vmem:[#allocation5 + $0xe0] sm:$0xff]
        %v305 = vld [vmem:[#allocation5 + $0xe8] sm:$0xff]
        %v306 = vld [vmem:[#allocation5 + $0xf0] sm:$0xff]
        %v307 = vld [vmem:[#allocation5 + $0xf8] sm:$0xff]
        %v308 = vld [vmem:[%s2] sm:$0x3]
        %v310 = vlaneseq
        %v311 = vshrl.u32 %v310, 7
        %v312 = vsub.s32 0, %v311
        %v313 = vrot.slane %v308, %v312
        %v314 = vlaneseq
        %v315 = vshrl.u32 %v314, 7
        %v316 = vsub.s32 1, %v315
        %v317 = vrot.slane %v308, %v316
        %320 = vmatprep.subr.mxu0 %v277
        %321 = vmatpush1.msra.mxu0 %v276
        %322 = vmatprep.subr.mxu0 %v279
        %323 = vmatpush1.msra.mxu0 %v278
        %324 = vmatprep.subr.mxu0 %v281
        %325 = vmatpush1.msra.mxu0 %v280
        %326 = vmatprep.subr.mxu0 %v283
        %327 = vmatpush1.msra.mxu0 %v282
        %328 = vmatprep.subr.mxu0 %v285
        %329 = vmatpush1.msra.mxu0 %v284
        %330 = vmatprep.subr.mxu0 %v287
        %331 = vmatpush1.msra.mxu0 %v286
        %332 = vmatprep.subr.mxu0 %v289
        %333 = vmatpush1.msra.mxu0 %v288
        %334 = vmatprep.subr.mxu0 %v291
        %335 = vmatpush1.msra.mxu0 %v290
        %336 = vmatprep.subr.mxu0 %v293
        %337 = vmatpush1.msra.mxu0 %v292
        %338 = vmatprep.subr.mxu0 %v295
        %339 = vmatpush1.msra.mxu0 %v294
        %340 = vmatprep.subr.mxu0 %v297
        %341 = vmatpush1.msra.mxu0 %v296
        %342 = vmatprep.subr.mxu0 %v299
        %343 = vmatpush1.msra.mxu0 %v298
        %344 = vmatprep.subr.mxu0 %v301
        %345 = vmatpush1.msra.mxu0 %v300
        %346 = vmatprep.subr.mxu0 %v303
        %347 = vmatpush1.msra.mxu0 %v302
        %348 = vmatprep.subr.mxu0 %v305
        %349 = vmatpush1.msra.mxu0 %v304
        %350 = vmatprep.subr.mxu0 %v307
        %351 = vmatpush1.msra.mxu0 %v306
        %352 = vmatprep.subr.mxu0 0.0
        %353 = vmatpush1.msra.mxu0 0.0
        %354 = vmatprep.subr.mxu0 0.0
        %355 = vmatpush1.msra.mxu0 0.0
        %356 = vmatprep.subr.mxu0 0.0
        %357 = vmatpush1.msra.mxu0 0.0
        %358 = vmatprep.subr.mxu0 0.0
        %359 = vmatpush1.msra.mxu0 0.0
        %360 = vmatprep.subr.mxu0 0.0
        %361 = vmatpush1.msra.mxu0 0.0
        %362 = vmatprep.subr.mxu0 0.0
        %363 = vmatpush1.msra.mxu0 0.0
        %364 = vmatprep.subr.mxu0 0.0
        %365 = vmatpush1.msra.mxu0 0.0
        %366 = vmatprep.subr.mxu0 0.0
        %367 = vmatpush1.msra.mxu0 0.0
        %368 = vmatprep.subr.mxu0 0.0
        %369 = vmatpush1.msra.mxu0 0.0
        %370 = vmatprep.subr.mxu0 0.0
        %371 = vmatpush1.msra.mxu0 0.0
        %372 = vmatprep.subr.mxu0 0.0
        %373 = vmatpush1.msra.mxu0 0.0
        %374 = vmatprep.subr.mxu0 0.0
        %375 = vmatpush1.msra.mxu0 0.0
        %376 = vmatprep.subr.mxu0 0.0
        %377 = vmatpush1.msra.mxu0 0.0
        %378 = vmatprep.subr.mxu0 0.0
        %379 = vmatpush1.msra.mxu0 0.0
        %380 = vmatprep.subr.mxu0 0.0
        %381 = vmatpush1.msra.mxu0 0.0
        %382 = vmatprep.subr.mxu0 0.0
        %383 = vmatpush1.msra.mxu0 0.0
        %384 = vmatprep.mubr.f32.mxu0 0.0
        %385 = vmatmul.mubr.f32.gmra.mrb[0].mxu0 %v274
        %v386 = vpop.f32.mrb[0].mxu0
        %v387 = vadd.f32 %v313, %v386
        %v388 = vpop.f32.mrb[0].mxu0
        %v389 = vadd.f32 %v317, %v388
        %390 = vmatprep.mubr.f32.mxu0 0.0
        %391 = vmatmul.mubr.f32.gmra.mrb[0].mxu0 %v275
        %v392 = vpop.f32.mrb[0].mxu0
        %v393 = vadd.f32 %v313, %v392
        %v394 = vpop.f32.mrb[0].mxu0
        %v395 = vadd.f32 %v317, %v394
        %396 = vdwg.mxu0
        %v397 = vmul.f32 %v387, 0.5
        %v398 = vmul.f32 %v389, 0.5
        %v399 = vmul.f32 %v393, 0.5
        %v400 = vmul.f32 %v395, 0.5
        %v401 = vmul.f32 %v387, 0.044715
        %v402 = vmul.f32 %v389, 0.044715
        %v403 = vmul.f32 %v393, 0.044715
        %v404 = vmul.f32 %v395, 0.044715
        %v405 = vmul.f32 %v401, %v387
        %v406 = vmul.f32 %v402, %v389
        %v407 = vmul.f32 %v403, %v393
        %v408 = vmul.f32 %v404, %v395
        %v409 = vmul.f32 %v405, %v387
        %v410 = vmul.f32 %v406, %v389
        %v411 = vmul.f32 %v407, %v393
        %v412 = vmul.f32 %v408, %v395
        %v413 = vadd.f32 %v387, %v409
        %v414 = vadd.f32 %v389, %v410
        %v415 = vadd.f32 %v393, %v411
        %v416 = vadd.f32 %v395, %v412
        %v417 = vmul.f32 %v413, 0.7978846
        %v418 = vmul.f32 %v414, 0.7978846
        %v419 = vmul.f32 %v415, 0.7978846
        %v420 = vmul.f32 %v416, 0.7978846
        %v421 = vtanh.pop %v417
        %v422 = vtanh.pop %v418
        %v423 = vtanh.pop %v419
        %v424 = vtanh.pop %v420
        %v425 = vadd.f32 %v421, 1.0
        %v426 = vadd.f32 %v422, 1.0
        %v427 = vadd.f32 %v423, 1.0
        %v428 = vadd.f32 %v424, 1.0
        %v429 = vmul.f32 %v397, %v425
        %v430 = vmul.f32 %v398, %v426
        %v431 = vmul.f32 %v399, %v427
        %v432 = vmul.f32 %v400, %v428
        %v433 = vld [vmem:[#allocation7] sm:$0xff]
        %v434 = vld [vmem:[#allocation7 + $0x8] sm:$0xff]
        %v435 = vld [vmem:[#allocation7 + $0x10] sm:$0xff]
        %v436 = vld [vmem:[#allocation7 + $0x18] sm:$0xff]
        %v437 = vld [vmem:[#allocation7 + $0x20] sm:$0xff]
        %v438 = vld [vmem:[#allocation7 + $0x28] sm:$0xff]
        %v439 = vld [vmem:[#allocation7 + $0x30] sm:$0xff]
        %v440 = vld [vmem:[#allocation7 + $0x38] sm:$0xff]
        %v441 = vld [vmem:[#allocation7 + $0x40] sm:$0xff]
        %v442 = vld [vmem:[#allocation7 + $0x48] sm:$0xff]
        %v443 = vld [vmem:[#allocation7 + $0x50] sm:$0xff]
        %v444 = vld [vmem:[#allocation7 + $0x58] sm:$0xff]
        %v445 = vld [vmem:[#allocation7 + $0x60] sm:$0xff]
        %v446 = vld [vmem:[#allocation7 + $0x68] sm:$0xff]
        %v447 = vld [vmem:[#allocation7 + $0x70] sm:$0xff]
        %v448 = vld [vmem:[#allocation7 + $0x78] sm:$0xff]
        %v449 = vld [vmem:[#allocation7 + $0x80] sm:$0xff]
        %v450 = vld [vmem:[#allocation7 + $0x88] sm:$0xff]
        %v451 = vld [vmem:[#allocation7 + $0x90] sm:$0xff]
        %v452 = vld [vmem:[#allocation7 + $0x98] sm:$0xff]
        %v453 = vld [vmem:[#allocation7 + $0xa0] sm:$0xff]
        %v454 = vld [vmem:[#allocation7 + $0xa8] sm:$0xff]
        %v455 = vld [vmem:[#allocation7 + $0xb0] sm:$0xff]
        %v456 = vld [vmem:[#allocation7 + $0xb8] sm:$0xff]
        %v457 = vld [vmem:[#allocation7 + $0xc0] sm:$0xff]
        %v458 = vld [vmem:[#allocation7 + $0xc8] sm:$0xff]
        %v459 = vld [vmem:[#allocation7 + $0xd0] sm:$0xff]
        %v460 = vld [vmem:[#allocation7 + $0xd8] sm:$0xff]
        %v461 = vld [vmem:[#allocation7 + $0xe0] sm:$0xff]
        %v462 = vld [vmem:[#allocation7 + $0xe8] sm:$0xff]
        %v463 = vld [vmem:[#allocation7 + $0xf0] sm:$0xff]
        %v464 = vld [vmem:[#allocation7 + $0xf8] sm:$0xff]
        %v465 = vld [vmem:[%s4] sm:$0x1]
        %v467 = vlaneseq
        %v468 = vshrl.u32 %v467, 7
        %v469 = vsub.s32 0, %v468
        %v470 = vrot.slane %v465, %v469
        %472 = vmatprep.subr.mxu0 0.0
        %473 = vmatpush1.msra.mxu0 %v433
        %474 = vmatprep.subr.mxu0 0.0
        %475 = vmatpush1.msra.mxu0 %v434
        %476 = vmatprep.subr.mxu0 0.0
        %477 = vmatpush1.msra.mxu0 %v435
        %478 = vmatprep.subr.mxu0 0.0
        %479 = vmatpush1.msra.mxu0 %v436
        %480 = vmatprep.subr.mxu0 0.0
        %481 = vmatpush1.msra.mxu0 %v437
        %482 = vmatprep.subr.mxu0 0.0
        %483 = vmatpush1.msra.mxu0 %v438
        %484 = vmatprep.subr.mxu0 0.0
        %485 = vmatpush1.msra.mxu0 %v439
        %486 = vmatprep.subr.mxu0 0.0
        %487 = vmatpush1.msra.mxu0 %v440
        %488 = vmatprep.subr.mxu0 0.0
        %489 = vmatpush1.msra.mxu0 %v441
        %490 = vmatprep.subr.mxu0 0.0
        %491 = vmatpush1.msra.mxu0 %v442
        %492 = vmatprep.subr.mxu0 0.0
        %493 = vmatpush1.msra.mxu0 %v443
        %494 = vmatprep.subr.mxu0 0.0
        %495 = vmatpush1.msra.mxu0 %v444
        %496 = vmatprep.subr.mxu0 0.0
        %497 = vmatpush1.msra.mxu0 %v445
        %498 = vmatprep.subr.mxu0 0.0
        %499 = vmatpush1.msra.mxu0 %v446
        %500 = vmatprep.subr.mxu0 0.0
        %501 = vmatpush1.msra.mxu0 %v447
        %502 = vmatprep.subr.mxu0 0.0
        %503 = vmatpush1.msra.mxu0 %v448
        %504 = vmatprep.subr.mxu0 0.0
        %505 = vmatpush1.msra.mxu0 %v449
        %506 = vmatprep.subr.mxu0 0.0
        %507 = vmatpush1.msra.mxu0 %v450
        %508 = vmatprep.subr.mxu0 0.0
        %509 = vmatpush1.msra.mxu0 %v451
        %510 = vmatprep.subr.mxu0 0.0
        %511 = vmatpush1.msra.mxu0 %v452
        %512 = vmatprep.subr.mxu0 0.0
        %513 = vmatpush1.msra.mxu0 %v453
        %514 = vmatprep.subr.mxu0 0.0
        %515 = vmatpush1.msra.mxu0 %v454
        %516 = vmatprep.subr.mxu0 0.0
        %517 = vmatpush1.msra.mxu0 %v455
        %518 = vmatprep.subr.mxu0 0.0
        %519 = vmatpush1.msra.mxu0 %v456
        %520 = vmatprep.subr.mxu0 0.0
        %521 = vmatpush1.msra.mxu0 %v457
        %522 = vmatprep.subr.mxu0 0.0
        %523 = vmatpush1.msra.mxu0 %v458
        %524 = vmatprep.subr.mxu0 0.0
        %525 = vmatpush1.msra.mxu0 %v459
        %526 = vmatprep.subr.mxu0 0.0
        %527 = vmatpush1.msra.mxu0 %v460
        %528 = vmatprep.subr.mxu0 0.0
        %529 = vmatpush1.msra.mxu0 %v461
        %530 = vmatprep.subr.mxu0 0.0
        %531 = vmatpush1.msra.mxu0 %v462
        %532 = vmatprep.subr.mxu0 0.0
        %533 = vmatpush1.msra.mxu0 %v463
        %534 = vmatprep.subr.mxu0 0.0
        %535 = vmatpush1.msra.mxu0 %v464
        %536 = vmatprep.mubr.f32.mxu0 %v430
        %537 = vmatmul.mubr.f32.gmra.mrb[0].mxu0 %v429
        %v538 = vpop.f32.mrb[0].mxu0
        %v539 = vadd.f32 %v470, %v538
        %v540 = vpop.f32.mrb[0].mxu0
        %541 = vmatprep.mubr.f32.mxu0 %v432
        %542 = vmatmul.mubr.f32.gmra.mrb[0].mxu0 %v431
        %v543 = vpop.f32.mrb[0].mxu0
        %v544 = vadd.f32 %v470, %v543
        %v545 = vpop.f32.mrb[0].mxu0
        %546 = vdwg.mxu0
        %547 = vst [vmem:[%s271] sm:$0xff] %v539
        %548 = vst [vmem:[%s271 + $0x8] sm:$0xff] %v544
        %s549 = sand.u32 %s141, 1
        %s550 = scalar_lea.sflag [#allocation4], %s549
        %s551 = sand.u32 %s141, 1
        %s552 = smul.addr %s551, 16
        %s553 = scalar_lea.vmem [#allocation8], %s552
        // Predicated region
        $region53: #{tpu_custom_call.1} parent=39 // pred_check
          %p554 = pneg %p151
        $region54: #{tpu_custom_call.1} parent=39 // pred_check_branch
          %556 = sbr.rel (%p554) target = $region56
        $region55: #{tpu_custom_call.1} parent=39 // pred_region
          %s557 = smul.u32 2, %s23
          %s559 = ssub.s32 256, 256
          %560 = vsyncadd %s550, %s559
          %s561 = smul.addr %s557, 128
          %s562 = scalar_lea.hbm %s5, %s561
          %s563 = sshll.u32 %s553, 4
          %s564 = int_to_ptr.vmem [resolvable:$true] %s563
          %569 = dma.vmem_to_hbm [thread:$0]  %s564, 256, %s562, %s550, 128, 128, 8
        $region56: #{tpu_custom_call.1} parent=39 // pred_fallthru
          _
      $region40: #{tpu_custom_call.1} parent=5 // pred_fallthru
        _
      %p570 = scmp.le.s32.totalorder 2, %s18
      // Predicated region
      $region57: #{tpu_custom_call.1} parent=5 // pred_check
        %p571 = pneg %p570
      $region58: #{tpu_custom_call.1} parent=5 // pred_check_branch
        %573 = sbr.rel (%p571) target = $region60
      $region59: #{tpu_custom_call.1} parent=5 // pred_region
        %s574 = ssub.s32 %s18, 2
        // Predicated region
        $region61: #{tpu_custom_call.1} parent=59 // pred_check
          %p575 = pneg %p157
        $region62: #{tpu_custom_call.1} parent=59 // pred_check_branch
          %577 = sbr.rel (%p575) target = $region64
        $region63: #{tpu_custom_call.1} parent=59 // pred_region
          %s578 = sand.u32 %s142, 1
          %s579 = scalar_lea.sflag [#allocation4], %s578
          %s580 = sand.u32 %s142, 1
          %s581 = smul.addr %s580, 16
          %s582 = scalar_lea.vmem [#allocation8], %s581
          %583 = dma.done %s579, 256
        $region64: #{tpu_custom_call.1} parent=59 // pred_fallthru
          _
      $region60: #{tpu_custom_call.1} parent=5 // pred_fallthru
        _
    $region6: #{tpu_custom_call.1} parent=1 // loop_footer
      %s22 = sadd.s32 1, %s18
    $region7: #{tpu_custom_call.1} parent=1 // loop_footer_branch
      %17 = sbr.rel target = $region3
    $region8: #{tpu_custom_call.1} parent=1 // loop_exit
      _
    %584 = vsyncpa [#allocation3], 1
    %s585 = scalar_lea.sflag [#allocation3], 1
    %586 = vsyncpa %s585, 1
    %587 = vsyncpa [#allocation6], 1
    %588 = vsyncpa [#allocation4], 1
    %s589 = scalar_lea.sflag [#allocation4], 1
    %590 = vsyncpa %s589, 1

</llo_original>
